<compile_context>
chip_gen: v7x
topology: tpu7x:2x2x1
jax: 0.10.0
libtpu: 0.0.40
codegen_flags: <defaults>
</compile_context>

<pallas_src>
import functools

import jax
import jax.numpy as jnp
from jax.experimental import pallas as pl
from jax.experimental.pallas import tpu as pltpu

IN_H = 28          # fixed by the PyTorch module (28x28 inputs)
NUM_CLASSES = 10
FC_HIDDEN = 50


def _vmem_specs(n):
    return [pl.BlockSpec(memory_space=pltpu.MemorySpace.VMEM) for _ in range(n)]


# ---------------------------------------------------------------------------
# The single fused forward kernel.
# ---------------------------------------------------------------------------
def fused_forward_kernel(lhs1_ref, w1_ref, b1_ref, w2_ref, b2_ref,
                         fc1w_ref, fc1b_ref, fc2w_ref, fc2b_ref, o_ref,
                         *, B, C1, C2, K2, HP1, AP2):
    f32 = jnp.float32

    # ---- Conv1 (Toeplitz matmul) -> MaxPool2d(2) -> bias -> ReLU ----------------
    # lhs1 rows: (dh1, a, b, hh)   with conv row  = 4*hh + 2*a  + dh1
    # w1  cols : (dw1, par, hp, c) with conv col  = 4*hp + 2*par + dw1
    d1 = jnp.dot(lhs1_ref[...], w1_ref[...], preferred_element_type=f32)  # (4*B*HP1, 4*HP1*C1)
    rh = 2 * B * HP1
    d1 = jnp.maximum(d1[:rh, :], d1[rh:, :])          # max over dh1 (row pool)
    cw = 2 * HP1 * C1
    d1 = jnp.maximum(d1[:, :cw], d1[:, cw:])          # max over dw1 (col pool)
    h1 = jnp.maximum(d1 + b1_ref[...], 0.0)
    # h1: rows (a, b, hh) -> pooled row 2*hh+a ; lanes (par, hp, c) -> pooled col 2*hp+par

    # ---- Conv2: im2col straight from h1 (contiguous static slices only) ---------
    blocks = []
    for dh2 in range(2):
        for b in range(B):
            feats = []
            for ki in range(K2):
                t = dh2 + ki
                a, s = t % 2, t // 2
                r0 = (a * B + b) * HP1 + s
                feats.append(h1[r0:r0 + AP2, :])                    # (AP2, 2*HP1*C1)
            blocks.append(jnp.concatenate(feats, axis=-1))          # (AP2, K2*2*HP1*C1)
    lhs2 = jnp.concatenate(blocks, axis=0).astype(jnp.bfloat16)     # rows (dh2, b, p2h)

    # w2 cols: (dw2, pc2, c2)
    d2 = jnp.dot(lhs2, w2_ref[...], preferred_element_type=f32)     # (2*B*AP2, 2*AP2*C2)
    rh2 = B * AP2
    d2 = jnp.maximum(d2[:rh2, :], d2[rh2:, :])        # max over dh2 (row pool)
    cw2 = AP2 * C2
    d2 = jnp.maximum(d2[:, :cw2], d2[:, cw2:])        # max over dw2 (col pool)
    h2 = jnp.maximum(d2 + b2_ref[...], 0.0)           # rows (b, p2h), lanes (p2w, c2)

    # ---- Flatten (fc1 weight columns were pre-permuted to this order) -----------
    rows = []
    for b in range(B):
        rows.append(jnp.concatenate(
            [h2[b * AP2 + p:b * AP2 + p + 1, :] for p in range(AP2)], axis=-1))
    flat = jnp.concatenate(rows, axis=0).astype(jnp.bfloat16)       # (B, AP2*AP2*C2)

    # ---- FC1 -> ReLU -> FC2 -> log_softmax --------------------------------------
    y = jnp.dot(flat, fc1w_ref[...], preferred_element_type=f32) + fc1b_ref[...]
    y = jnp.maximum(y, 0.0).astype(jnp.bfloat16)
    z = jnp.dot(y, fc2w_ref[...], preferred_element_type=f32) + fc2b_ref[...]
    m = jnp.max(z, axis=-1, keepdims=True)
    lse = jnp.log(jnp.sum(jnp.exp(z - m), axis=-1, keepdims=True)) + m
    o_ref[...] = z - lse


# ---------------------------------------------------------------------------
# One-time parameter repack (outside jit): PyTorch layout -> fused-kernel layout.
# ---------------------------------------------------------------------------
def _dims(params):
    C1, _, K1, _ = params["conv1_w"].shape
    C2, _, K2, _ = params["conv2_w"].shape
    OH1 = IN_H - K1 + 1
    AP1 = OH1 // 2
    HP1 = AP1 // 2
    OH2 = AP1 - K2 + 1
    AP2 = OH2 // 2
    assert OH1 % 4 == 0 and OH2 % 2 == 0 and K2 // 2 + AP2 <= HP1, "unsupported config"
    return dict(C1=int(C1), K1=int(K1), C2=int(C2), K2=int(K2),
                OH1=OH1, AP1=AP1, HP1=HP1, OH2=OH2, AP2=AP2)


def prepare_params(params):
    d = _dims(params)
    C1, K1, C2, K2, HP1, AP2 = d["C1"], d["K1"], d["C2"], d["K2"], d["HP1"], d["AP2"]

    # Conv1 Toeplitz weight: rows (ki, col) over a K1-row strip of the 28-wide input,
    # cols (dw1, par, hp, ch) so pooling / parity split are contiguous in-kernel.
    w1 = params["conv1_w"][:, 0, :, :]                               # (C1, K1, K1)
    ki = jnp.arange(K1).reshape(K1, 1, 1, 1, 1, 1)
    col = jnp.arange(IN_H).reshape(1, IN_H, 1, 1, 1, 1)
    dw = jnp.arange(2).reshape(1, 1, 2, 1, 1, 1)
    par = jnp.arange(2).reshape(1, 1, 1, 2, 1, 1)
    hp = jnp.arange(HP1).reshape(1, 1, 1, 1, HP1, 1)
    ch = jnp.arange(C1).reshape(1, 1, 1, 1, 1, C1)
    kj = col - (4 * hp + 2 * par + dw)
    w1_toep = jnp.where((kj >= 0) & (kj < K1),
                        w1[ch, ki, jnp.clip(kj, 0, K1 - 1)], 0.0)
    w1_toep = w1_toep.reshape(K1 * IN_H, 4 * HP1 * C1)

    # Conv2 Toeplitz weight: rows (ki, par, hp, ch) = one K2-row strip of h1's lane
    # layout, cols (dw2, pc2, ch2).
    w2 = params["conv2_w"]                                           # (C2, C1, K2, K2)
    ki = jnp.arange(K2).reshape(K2, 1, 1, 1, 1, 1, 1)
    par = jnp.arange(2).reshape(1, 2, 1, 1, 1, 1, 1)
    hp = jnp.arange(HP1).reshape(1, 1, HP1, 1, 1, 1, 1)
    ch = jnp.arange(C1).reshape(1, 1, 1, C1, 1, 1, 1)
    dw = jnp.arange(2).reshape(1, 1, 1, 1, 2, 1, 1)
    pc = jnp.arange(AP2).reshape(1, 1, 1, 1, 1, AP2, 1)
    ch2 = jnp.arange(C2).reshape(1, 1, 1, 1, 1, 1, C2)
    kj = (2 * hp + par) - (2 * pc + dw)
    w2_toep = jnp.where((kj >= 0) & (kj < K2),
                        w2[ch2, ch, ki, jnp.clip(kj, 0, K2 - 1)], 0.0)
    w2_toep = w2_toep.reshape(K2 * 2 * HP1 * C1, 2 * AP2 * C2)

    # fc1: absorb the kernel's (p2h, p2w, ch2) flatten order (vs PyTorch NCHW view).
    fc1w = params["fc1_w"].reshape(FC_HIDDEN, C2, AP2, AP2)
    fc1w = jnp.transpose(fc1w, (0, 2, 3, 1)).reshape(FC_HIDDEN, AP2 * AP2 * C2).T

    prepped = {
        "w1": w1_toep.astype(jnp.bfloat16),
        "b1": jnp.tile(params["conv1_b"], 2 * HP1).reshape(1, -1).astype(jnp.float32),
        "w2": w2_toep.astype(jnp.bfloat16),
        "b2": jnp.tile(params["conv2_b"], AP2).reshape(1, -1).astype(jnp.float32),
        "fc1_w": fc1w.astype(jnp.bfloat16),
        "fc1_b": params["fc1_b"].reshape(1, -1).astype(jnp.float32),
        "fc2_w": params["fc2_w"].T.astype(jnp.bfloat16),
        "fc2_b": params["fc2_b"].reshape(1, -1).astype(jnp.float32),
    }
    return prepped, d


# ---------------------------------------------------------------------------
# Forward (one pallas_call).
# ---------------------------------------------------------------------------
def ex_network_forward(prepped, dims, x_nchw):
    B = x_nchw.shape[0]
    K1, C1, C2, K2 = dims["K1"], dims["C1"], dims["C2"], dims["K2"]
    OH1, HP1, AP2 = dims["OH1"], dims["HP1"], dims["AP2"]

    # Runtime glue (a handful of fused XLA ops, ~13 KB): parity-ordered conv1 operand.
    # Rows (dh1, a, b, hh), features (ki, col).
    x3 = x_nchw.reshape(B, IN_H, IN_H).astype(jnp.float32)
    strips = jnp.concatenate([x3[:, k:k + OH1, :] for k in range(K1)], axis=-1)
    strips = strips.reshape(B, HP1, 2, 2, K1 * IN_H)            # (b, hh, a, dh1, feat)
    lhs1 = jnp.transpose(strips, (3, 2, 0, 1, 4)).reshape(4 * B * HP1, K1 * IN_H)
    lhs1 = lhs1.astype(jnp.bfloat16)

    # TODO(synk): nn.Dropout(0.5) is inference-mode identity; training-mode dropout not implemented.
    # TODO(synk): for non-toy batches add a grid over batch rows with
    # dimension_semantics=("parallel",) (v7x second TensorCore) and re-tile for 64 MiB VMEM.
    kernel = functools.partial(fused_forward_kernel,
                               B=B, C1=C1, C2=C2, K2=K2, HP1=HP1, AP2=AP2)

    n1, n2 = 4 * HP1 * C1, 2 * AP2 * C2
    lin = AP2 * AP2 * C2
    flops = 2 * ((4 * B * HP1) * (K1 * IN_H) * n1
                 + (2 * B * AP2) * (K2 * 2 * HP1 * C1) * n2
                 + B * lin * FC_HIDDEN + B * FC_HIDDEN * NUM_CLASSES)
    operands = (lhs1, prepped["w1"], prepped["b1"], prepped["w2"], prepped["b2"],
                prepped["fc1_w"], prepped["fc1_b"], prepped["fc2_w"], prepped["fc2_b"])
    bytes_accessed = sum(int(a.size) * a.dtype.itemsize for a in operands)
    bytes_accessed += B * NUM_CLASSES * 4

    return pl.pallas_call(
        kernel,
        out_shape=jax.ShapeDtypeStruct((B, NUM_CLASSES), jnp.float32),
        in_specs=_vmem_specs(len(operands)),
        out_specs=pl.BlockSpec(memory_space=pltpu.MemorySpace.VMEM),
        cost_estimate=pl.CostEstimate(flops=flops,
                                      transcendentals=B * (NUM_CLASSES + 1),
                                      bytes_accessed=bytes_accessed),
    )(*operands)


# ---------------------------------------------------------------------------
# Pure-JAX reference (PyTorch semantics) for a correctness check.
# ---------------------------------------------------------------------------
def reference_forward(params, x_nchw):
    dn = ("NCHW", "OIHW", "NCHW")
    y = jax.lax.conv_general_dilated(x_nchw, params["conv1_w"], (1, 1), "VALID",
                                     dimension_numbers=dn)
    y = y + params["conv1_b"].reshape(1, -1, 1, 1)
    B, C, H, W = y.shape
    y = jax.nn.relu(jnp.max(y.reshape(B, C, H // 2, 2, W // 2, 2), axis=(3, 5)))
    y = jax.lax.conv_general_dilated(y, params["conv2_w"], (1, 1), "VALID",
                                     dimension_numbers=dn)
    y = y + params["conv2_b"].reshape(1, -1, 1, 1)
    B, C, H, W = y.shape
    y = jax.nn.relu(jnp.max(y.reshape(B, C, H // 2, 2, W // 2, 2), axis=(3, 5)))
    y = y.reshape(B, -1)
    y = jax.nn.relu(y @ params["fc1_w"].T + params["fc1_b"])
    y = y @ params["fc2_w"].T + params["fc2_b"]
    return jax.nn.log_softmax(y, axis=1)


# ---------------------------------------------------------------------------
# Deterministic synthetic parameters + driver
# ---------------------------------------------------------------------------
def init_params(key, filters_1, kernel_1, filters_2, kernel_2, linear_size):
    ks = jax.random.split(key, 8)
    s = 0.1
    return {
        "conv1_w": s * jax.random.normal(ks[0], (filters_1, 1, kernel_1, kernel_1), jnp.float32),
        "conv1_b": s * jax.random.normal(ks[1], (filters_1,), jnp.float32),
        "conv2_w": s * jax.random.normal(ks[2], (filters_2, filters_1, kernel_2, kernel_2), jnp.float32),
        "conv2_b": s * jax.random.normal(ks[3], (filters_2,), jnp.float32),
        "fc1_w": s * jax.random.normal(ks[4], (FC_HIDDEN, linear_size), jnp.float32),
        "fc1_b": s * jax.random.normal(ks[5], (FC_HIDDEN,), jnp.float32),
        "fc2_w": s * jax.random.normal(ks[6], (NUM_CLASSES, FC_HIDDEN), jnp.float32),
        "fc2_b": s * jax.random.normal(ks[7], (NUM_CLASSES,), jnp.float32),
    }


if __name__ == "__main__":
    filters_1, kernel_1, filters_2, kernel_2 = 4, 5, 8, 3
    after_pool1 = (IN_H - kernel_1 + 1) // 2            # 12
    after_pool2 = (after_pool1 - kernel_2 + 1) // 2     # 5
    linear_size = filters_2 * after_pool2 * after_pool2 # 200

    key = jax.random.PRNGKey(0)
    pkey, xkey = jax.random.split(key)
    params = init_params(pkey, filters_1, kernel_1, filters_2, kernel_2, linear_size)

    batch = 2
    x = jax.random.normal(xkey, (batch, 1, IN_H, IN_H), jnp.float32)

    prepped, dims = prepare_params(params)
    fwd = jax.jit(functools.partial(ex_network_forward, prepped, dims))
    out = jax.block_until_ready(fwd(x))

    assert out.shape == (batch, NUM_CLASSES), out.shape
    # log_softmax sanity: rows exponentiate and sum to 1.
    assert jnp.allclose(jnp.sum(jnp.exp(out), axis=1), 1.0, atol=1e-3)
    # Match the PyTorch-semantics reference (bf16 MXU operands -> loose tolerance).
    ref = reference_forward(params, x)
    assert jnp.allclose(out, ref, atol=5e-2), (out, ref)
    print("KERNEL_OK")
</pallas_src>

<mosaic_0001>
module attributes {stable_mosaic.version = 11 : i64} {
  func.func @fused_forward_kernel(%arg0: memref<48x140xbf16, #tpu.memory_space<vmem>>, %arg1: memref<140x96xbf16, #tpu.memory_space<vmem>>, %arg2: memref<1x48xf32, #tpu.memory_space<vmem>>, %arg3: memref<144x80xbf16, #tpu.memory_space<vmem>>, %arg4: memref<1x40xf32, #tpu.memory_space<vmem>>, %arg5: memref<200x50xbf16, #tpu.memory_space<vmem>>, %arg6: memref<1x50xf32, #tpu.memory_space<vmem>>, %arg7: memref<50x10xbf16, #tpu.memory_space<vmem>>, %arg8: memref<1x10xf32, #tpu.memory_space<vmem>>, %arg9: memref<2x10xf32, #tpu.memory_space<vmem>>) attributes {dimension_semantics = [], scalar_prefetch = 0 : i64, scratch_operands = 0 : i64, tpu.core_type = #tpu.core_type<tc>} {
    %c0 = arith.constant 0 : index
    %c0_0 = arith.constant 0 : index
    %0 = vector.load %arg0[%c0, %c0_0] : memref<48x140xbf16, #tpu.memory_space<vmem>>, vector<48x140xbf16>
    %c0_1 = arith.constant 0 : index
    %c0_2 = arith.constant 0 : index
    %1 = vector.load %arg1[%c0_1, %c0_2] : memref<140x96xbf16, #tpu.memory_space<vmem>>, vector<140x96xbf16>
    %cst = arith.constant dense<0.000000e+00> : vector<48x96xf32>
    %2 = tpu.matmul %0, %1, %cst {dimension_numbers = #tpu.dot_dimension_numbers<[1], [0], [0], [1], [0, 0, 1, 1], [], []>} : vector<48x140xbf16>, vector<140x96xbf16>, vector<48x96xf32> -> vector<48x96xf32>
    %3 = vector.extract_strided_slice %2 {offsets = [0, 0], sizes = [24, 96], strides = [1, 1]} : vector<48x96xf32> to vector<24x96xf32>
    %4 = vector.extract_strided_slice %2 {offsets = [24, 0], sizes = [24, 96], strides = [1, 1]} : vector<48x96xf32> to vector<24x96xf32>
    %5 = arith.maximumf %3, %4 : vector<24x96xf32>
    %6 = vector.extract_strided_slice %5 {offsets = [0, 0], sizes = [24, 48], strides = [1, 1]} : vector<24x96xf32> to vector<24x48xf32>
    %7 = vector.extract_strided_slice %5 {offsets = [0, 48], sizes = [24, 48], strides = [1, 1]} : vector<24x96xf32> to vector<24x48xf32>
    %8 = arith.maximumf %6, %7 : vector<24x48xf32>
    %c0_3 = arith.constant 0 : index
    %c0_4 = arith.constant 0 : index
    %9 = vector.load %arg2[%c0_3, %c0_4] : memref<1x48xf32, #tpu.memory_space<vmem>>, vector<1x48xf32>
    %10 = vector.broadcast %9 : vector<1x48xf32> to vector<24x48xf32>
    %11 = arith.addf %8, %10 : vector<24x48xf32>
    %cst_5 = arith.constant 0.000000e+00 : f32
    %12 = vector.broadcast %cst_5 : f32 to vector<24x48xf32>
    %13 = arith.maximumf %11, %12 : vector<24x48xf32>
    %14 = vector.extract_strided_slice %13 {offsets = [0, 0], sizes = [5, 48], strides = [1, 1]} : vector<24x48xf32> to vector<5x48xf32>
    %15 = vector.extract_strided_slice %13 {offsets = [12, 0], sizes = [5, 48], strides = [1, 1]} : vector<24x48xf32> to vector<5x48xf32>
    %16 = vector.extract_strided_slice %13 {offsets = [1, 0], sizes = [5, 48], strides = [1, 1]} : vector<24x48xf32> to vector<5x48xf32>
    %17 = tpu.concatenate %14, %15, %16 in 1 : vector<5x48xf32>, vector<5x48xf32>, vector<5x48xf32> -> vector<5x144xf32>
    %18 = vector.extract_strided_slice %13 {offsets = [6, 0], sizes = [5, 48], strides = [1, 1]} : vector<24x48xf32> to vector<5x48xf32>
    %19 = vector.extract_strided_slice %13 {offsets = [18, 0], sizes = [5, 48], strides = [1, 1]} : vector<24x48xf32> to vector<5x48xf32>
    %20 = vector.extract_strided_slice %13 {offsets = [7, 0], sizes = [5, 48], strides = [1, 1]} : vector<24x48xf32> to vector<5x48xf32>
    %21 = tpu.concatenate %18, %19, %20 in 1 : vector<5x48xf32>, vector<5x48xf32>, vector<5x48xf32> -> vector<5x144xf32>
    %22 = vector.extract_strided_slice %13 {offsets = [12, 0], sizes = [5, 48], strides = [1, 1]} : vector<24x48xf32> to vector<5x48xf32>
    %23 = vector.extract_strided_slice %13 {offsets = [1, 0], sizes = [5, 48], strides = [1, 1]} : vector<24x48xf32> to vector<5x48xf32>
    %24 = vector.extract_strided_slice %13 {offsets = [13, 0], sizes = [5, 48], strides = [1, 1]} : vector<24x48xf32> to vector<5x48xf32>
    %25 = tpu.concatenate %22, %23, %24 in 1 : vector<5x48xf32>, vector<5x48xf32>, vector<5x48xf32> -> vector<5x144xf32>
    %26 = vector.extract_strided_slice %13 {offsets = [18, 0], sizes = [5, 48], strides = [1, 1]} : vector<24x48xf32> to vector<5x48xf32>
    %27 = vector.extract_strided_slice %13 {offsets = [7, 0], sizes = [5, 48], strides = [1, 1]} : vector<24x48xf32> to vector<5x48xf32>
    %28 = vector.extract_strided_slice %13 {offsets = [19, 0], sizes = [5, 48], strides = [1, 1]} : vector<24x48xf32> to vector<5x48xf32>
    %29 = tpu.concatenate %26, %27, %28 in 1 : vector<5x48xf32>, vector<5x48xf32>, vector<5x48xf32> -> vector<5x144xf32>
    %30 = tpu.concatenate %17, %21, %25, %29 in 0 : vector<5x144xf32>, vector<5x144xf32>, vector<5x144xf32>, vector<5x144xf32> -> vector<20x144xf32>
    %31 = arith.truncf %30 : vector<20x144xf32> to vector<20x144xbf16>
    %c0_6 = arith.constant 0 : index
    %c0_7 = arith.constant 0 : index
    %32 = vector.load %arg3[%c0_6, %c0_7] : memref<144x80xbf16, #tpu.memory_space<vmem>>, vector<144x80xbf16>
    %cst_8 = arith.constant dense<0.000000e+00> : vector<20x80xf32>
    %33 = tpu.matmul %31, %32, %cst_8 {dimension_numbers = #tpu.dot_dimension_numbers<[1], [0], [0], [1], [0, 0, 1, 1], [], []>} : vector<20x144xbf16>, vector<144x80xbf16>, vector<20x80xf32> -> vector<20x80xf32>
    %34 = vector.extract_strided_slice %33 {offsets = [0, 0], sizes = [10, 80], strides = [1, 1]} : vector<20x80xf32> to vector<10x80xf32>
    %35 = vector.extract_strided_slice %33 {offsets = [10, 0], sizes = [10, 80], strides = [1, 1]} : vector<20x80xf32> to vector<10x80xf32>
    %36 = arith.maximumf %34, %35 : vector<10x80xf32>
    %37 = vector.extract_strided_slice %36 {offsets = [0, 0], sizes = [10, 40], strides = [1, 1]} : vector<10x80xf32> to vector<10x40xf32>
    %38 = vector.extract_strided_slice %36 {offsets = [0, 40], sizes = [10, 40], strides = [1, 1]} : vector<10x80xf32> to vector<10x40xf32>
    %39 = arith.maximumf %37, %38 : vector<10x40xf32>
    %c0_9 = arith.constant 0 : index
    %c0_10 = arith.constant 0 : index
    %40 = vector.load %arg4[%c0_9, %c0_10] : memref<1x40xf32, #tpu.memory_space<vmem>>, vector<1x40xf32>
    %41 = vector.broadcast %40 : vector<1x40xf32> to vector<10x40xf32>
    %42 = arith.addf %39, %41 : vector<10x40xf32>
    %cst_11 = arith.constant 0.000000e+00 : f32
    %43 = vector.broadcast %cst_11 : f32 to vector<10x40xf32>
    %44 = arith.maximumf %42, %43 : vector<10x40xf32>
    %45 = vector.extract_strided_slice %44 {offsets = [0, 0], sizes = [1, 40], strides = [1, 1]} : vector<10x40xf32> to vector<1x40xf32>
    %46 = vector.extract_strided_slice %44 {offsets = [1, 0], sizes = [1, 40], strides = [1, 1]} : vector<10x40xf32> to vector<1x40xf32>
    %47 = vector.extract_strided_slice %44 {offsets = [2, 0], sizes = [1, 40], strides = [1, 1]} : vector<10x40xf32> to vector<1x40xf32>
    %48 = vector.extract_strided_slice %44 {offsets = [3, 0], sizes = [1, 40], strides = [1, 1]} : vector<10x40xf32> to vector<1x40xf32>
    %49 = vector.extract_strided_slice %44 {offsets = [4, 0], sizes = [1, 40], strides = [1, 1]} : vector<10x40xf32> to vector<1x40xf32>
    %50 = tpu.concatenate %45, %46, %47, %48, %49 in 1 : vector<1x40xf32>, vector<1x40xf32>, vector<1x40xf32>, vector<1x40xf32>, vector<1x40xf32> -> vector<1x200xf32>
    %51 = vector.extract_strided_slice %44 {offsets = [5, 0], sizes = [1, 40], strides = [1, 1]} : vector<10x40xf32> to vector<1x40xf32>
    %52 = vector.extract_strided_slice %44 {offsets = [6, 0], sizes = [1, 40], strides = [1, 1]} : vector<10x40xf32> to vector<1x40xf32>
    %53 = vector.extract_strided_slice %44 {offsets = [7, 0], sizes = [1, 40], strides = [1, 1]} : vector<10x40xf32> to vector<1x40xf32>
    %54 = vector.extract_strided_slice %44 {offsets = [8, 0], sizes = [1, 40], strides = [1, 1]} : vector<10x40xf32> to vector<1x40xf32>
    %55 = vector.extract_strided_slice %44 {offsets = [9, 0], sizes = [1, 40], strides = [1, 1]} : vector<10x40xf32> to vector<1x40xf32>
    %56 = tpu.concatenate %51, %52, %53, %54, %55 in 1 : vector<1x40xf32>, vector<1x40xf32>, vector<1x40xf32>, vector<1x40xf32>, vector<1x40xf32> -> vector<1x200xf32>
    %57 = tpu.concatenate %50, %56 in 0 : vector<1x200xf32>, vector<1x200xf32> -> vector<2x200xf32>
    %58 = arith.truncf %57 : vector<2x200xf32> to vector<2x200xbf16>
    %c0_12 = arith.constant 0 : index
    %c0_13 = arith.constant 0 : index
    %59 = vector.load %arg5[%c0_12, %c0_13] : memref<200x50xbf16, #tpu.memory_space<vmem>>, vector<200x50xbf16>
    %cst_14 = arith.constant dense<0.000000e+00> : vector<2x50xf32>
    %60 = tpu.matmul %58, %59, %cst_14 {dimension_numbers = #tpu.dot_dimension_numbers<[1], [0], [0], [1], [0, 0, 1, 1], [], []>} : vector<2x200xbf16>, vector<200x50xbf16>, vector<2x50xf32> -> vector<2x50xf32>
    %c0_15 = arith.constant 0 : index
    %c0_16 = arith.constant 0 : index
    %61 = vector.load %arg6[%c0_15, %c0_16] : memref<1x50xf32, #tpu.memory_space<vmem>>, vector<1x50xf32>
    %62 = vector.broadcast %61 : vector<1x50xf32> to vector<2x50xf32>
    %63 = arith.addf %60, %62 : vector<2x50xf32>
    %cst_17 = arith.constant 0.000000e+00 : f32
    %64 = vector.broadcast %cst_17 : f32 to vector<2x50xf32>
    %65 = arith.maximumf %63, %64 : vector<2x50xf32>
    %66 = arith.truncf %65 : vector<2x50xf32> to vector<2x50xbf16>
    %c0_18 = arith.constant 0 : index
    %c0_19 = arith.constant 0 : index
    %67 = vector.load %arg7[%c0_18, %c0_19] : memref<50x10xbf16, #tpu.memory_space<vmem>>, vector<50x10xbf16>
    %cst_20 = arith.constant dense<0.000000e+00> : vector<2x10xf32>
    %68 = tpu.matmul %66, %67, %cst_20 {dimension_numbers = #tpu.dot_dimension_numbers<[1], [0], [0], [1], [0, 0, 1, 1], [], []>} : vector<2x50xbf16>, vector<50x10xbf16>, vector<2x10xf32> -> vector<2x10xf32>
    %c0_21 = arith.constant 0 : index
    %c0_22 = arith.constant 0 : index
    %69 = vector.load %arg8[%c0_21, %c0_22] : memref<1x10xf32, #tpu.memory_space<vmem>>, vector<1x10xf32>
    %70 = vector.broadcast %69 : vector<1x10xf32> to vector<2x10xf32>
    %71 = arith.addf %68, %70 : vector<2x10xf32>
    %cst_23 = arith.constant dense<0xFF800000> : vector<2xf32>
    %72 = vector.multi_reduction <maximumf>, %71, %cst_23 [1] : vector<2x10xf32> to vector<2xf32>
    %73 = vector.shape_cast %72 : vector<2xf32> to vector<2x1xf32>
    %74 = vector.broadcast %73 : vector<2x1xf32> to vector<2x10xf32>
    %75 = arith.subf %71, %74 : vector<2x10xf32>
    %76 = math.exp %75 : vector<2x10xf32>
    %cst_24 = arith.constant dense<0.000000e+00> : vector<2xf32>
    %77 = vector.multi_reduction <add>, %76, %cst_24 [1] : vector<2x10xf32> to vector<2xf32>
    %78 = vector.shape_cast %77 : vector<2xf32> to vector<2x1xf32>
    %79 = math.log %78 : vector<2x1xf32>
    %80 = arith.addf %79, %73 : vector<2x1xf32>
    %81 = vector.broadcast %80 : vector<2x1xf32> to vector<2x10xf32>
    %82 = arith.subf %71, %81 : vector<2x10xf32>
    %c0_25 = arith.constant 0 : index
    %c0_26 = arith.constant 0 : index
    %83 = vector.load %arg9[%c0_25, %c0_26] : memref<2x10xf32, #tpu.memory_space<vmem>>, vector<2x10xf32>
    tpu.vector_store %arg9[%c0_25, %c0_26], %82 {strides = array<i32>} : memref<2x10xf32, #tpu.memory_space<vmem>>, vector<2x10xf32>,
    return
  }
}

</mosaic_0001>

<llo_original>
// kernel: ex_network_forward.1
$region0: #{ex_network_forward.1}
  #allocation0 [shape = 'u32[]', space=smem, size = 0x4, offset = 0x4, fixed_abs, tag = 'smem constant byte address 0x4 - core index']
  #allocation1 [shape = 'u32[144,128]{1,0:T(1,128)}', space=vmem, size = 0x12000, scoped, tag = 'internal scratch']
  %s0 = inlined_call_operand.vmem [shape: bf16[48,140], index: 0, kind: input, shape index: {}]
  %s1 = inlined_call_operand.vmem [shape: bf16[140,96], index: 1, kind: input, shape index: {}]
  %s2 = inlined_call_operand.vmem [shape: f32[1,48], index: 2, kind: input, shape index: {}]
  %s3 = inlined_call_operand.vmem [shape: bf16[144,80], index: 3, kind: input, shape index: {}]
  %s4 = inlined_call_operand.vmem [shape: f32[1,40], index: 4, kind: input, shape index: {}]
  %s5 = inlined_call_operand.vmem [shape: bf16[200,50], index: 5, kind: input, shape index: {}]
  %s6 = inlined_call_operand.vmem [shape: f32[1,50], index: 6, kind: input, shape index: {}]
  %s7 = inlined_call_operand.vmem [shape: bf16[50,10], index: 7, kind: input, shape index: {}]
  %s8 = inlined_call_operand.vmem [shape: f32[1,10], index: 8, kind: input, shape index: {}]
  %s9 = inlined_call_operand.hbm [shape: f32[2,10], index: 9, kind: output, shape index: {}]
  %s10 = sld [smem:[#allocation0]]
  $region46: #{ex_network_forward.1} parent=0
    _
  %s12 = ssub.s32 1, %s10
  %s13 = scalar_select 0, %s12, %s10
  $region1: #{ex_network_forward.1} parent=0
    #allocation2 [shape = 'u8[1024]{0}', space=vmem, size = 0x400, scoped, tag = 'output window, operand 0, single buffered']
    #allocation3 [shape = 's32[1]{0}', space=sflag, size = 0x4, scoped, tag = 'scoped memory for ex_network_forward.1']
    %14 = vsyncpa [#allocation3], 0
    // Predicated region
    $region2: #{ex_network_forward.1} parent=1 // pred_check
      _
    $region3: #{ex_network_forward.1} parent=1 // pred_check_branch
      %16 = sbr.rel (0) target = $region5
    $region4: #{ex_network_forward.1} parent=1 // pred_region
      _
    $region5: #{ex_network_forward.1} parent=1 // pred_fallthru
      _
    // Predicated region
    $region6: #{ex_network_forward.1} parent=1 // pred_check
      _
    $region7: #{ex_network_forward.1} parent=1 // pred_check_branch
      %18 = sbr.rel (0) target = $region9
    $region8: #{ex_network_forward.1} parent=1 // pred_region
      _
    $region9: #{ex_network_forward.1} parent=1 // pred_fallthru
      _
    // Predicated region
    $region10: #{ex_network_forward.1} parent=1 // pred_check
      _
    $region11: #{ex_network_forward.1} parent=1 // pred_check_branch
      %20 = sbr.rel (0) target = $region13
    $region12: #{ex_network_forward.1} parent=1 // pred_region
      _
    $region13: #{ex_network_forward.1} parent=1 // pred_fallthru
      _
    // Predicated region
    $region14: #{ex_network_forward.1} parent=1 // pred_check
      _
    $region15: #{ex_network_forward.1} parent=1 // pred_check_branch
      %22 = sbr.rel (0) target = $region17
    $region16: #{ex_network_forward.1} parent=1 // pred_region
      _
    $region17: #{ex_network_forward.1} parent=1 // pred_fallthru
      _
    // Predicated region
    $region18: #{ex_network_forward.1} parent=1 // pred_check
      _
    $region19: #{ex_network_forward.1} parent=1 // pred_check_branch
      %24 = sbr.rel (0) target = $region21
    $region20: #{ex_network_forward.1} parent=1 // pred_region
      _
    $region21: #{ex_network_forward.1} parent=1 // pred_fallthru
      _
    // Predicated region
    $region22: #{ex_network_forward.1} parent=1 // pred_check
      _
    $region23: #{ex_network_forward.1} parent=1 // pred_check_branch
      %26 = sbr.rel (0) target = $region25
    $region24: #{ex_network_forward.1} parent=1 // pred_region
      _
    $region25: #{ex_network_forward.1} parent=1 // pred_fallthru
      _
    // Predicated region
    $region26: #{ex_network_forward.1} parent=1 // pred_check
      _
    $region27: #{ex_network_forward.1} parent=1 // pred_check_branch
      %28 = sbr.rel (0) target = $region29
    $region28: #{ex_network_forward.1} parent=1 // pred_region
      _
    $region29: #{ex_network_forward.1} parent=1 // pred_fallthru
      _
    // Predicated region
    $region30: #{ex_network_forward.1} parent=1 // pred_check
      _
    $region31: #{ex_network_forward.1} parent=1 // pred_check_branch
      %30 = sbr.rel (0) target = $region33
    $region32: #{ex_network_forward.1} parent=1 // pred_region
      _
    $region33: #{ex_network_forward.1} parent=1 // pred_fallthru
      _
    // Predicated region
    $region34: #{ex_network_forward.1} parent=1 // pred_check
      _
    $region35: #{ex_network_forward.1} parent=1 // pred_check_branch
      %32 = sbr.rel (0) target = $region37
    $region36: #{ex_network_forward.1} parent=1 // pred_region
      _
    $region37: #{ex_network_forward.1} parent=1 // pred_fallthru
      _
    %v34 = vld [vmem:[%s0] sm:$0xff]
    %v35 = vld [vmem:[%s0 + $0x8] sm:$0xff]
    %v36 = vld [vmem:[%s0 + $0x10] sm:$0xff]
    %v37 = vld [vmem:[%s0 + $0x18] sm:$0xff]
    %v38 = vld [vmem:[%s0 + $0x20] sm:$0xff]
    %v39 = vld [vmem:[%s0 + $0x28] sm:$0xff]
    %v40 = vld [vmem:[%s1] sm:$0xf]
    %v41 = vld [vmem:[%s1 + $0x4] sm:$0xf]
    %v42 = vld [vmem:[%s1 + $0x8] sm:$0xf]
    %v43 = vld [vmem:[%s1 + $0xc] sm:$0xf]
    %v44 = vld [vmem:[%s1 + $0x10] sm:$0xf]
    %v45 = vld [vmem:[%s1 + $0x14] sm:$0xf]
    %v46 = vld [vmem:[%s1 + $0x18] sm:$0xf]
    %v47 = vld [vmem:[%s1 + $0x1c] sm:$0xf]
    %v48 = vld [vmem:[%s1 + $0x20] sm:$0xf]
    %v49 = vld [vmem:[%s1 + $0x24] sm:$0xf]
    %v50 = vld [vmem:[%s1 + $0x28] sm:$0xf]
    %v51 = vld [vmem:[%s1 + $0x2c] sm:$0xf]
    %v52 = vld [vmem:[%s1 + $0x30] sm:$0xf]
    %v53 = vld [vmem:[%s1 + $0x34] sm:$0xf]
    %v54 = vld [vmem:[%s1 + $0x38] sm:$0xf]
    %v55 = vld [vmem:[%s1 + $0x3c] sm:$0xf]
    %v56 = vld [vmem:[%s1 + $0x40] sm:$0xf]
    %v57 = vld [vmem:[%s1 + $0x44] sm:$0x3]
    %v64 = vunpack.c.l.b16 %v34
    %v65 = vunpack.c.h.b16 %v34
    %v66 = vunpack.c.l.b16 %v35
    %v67 = vunpack.c.h.b16 %v35
    %v68 = vunpack.c.l.b16 %v36
    %v69 = vunpack.c.h.b16 %v36
    %v70 = vunpack.c.l.b16 %v37
    %v71 = vunpack.c.h.b16 %v37
    %v72 = vunpack.c.l.b16 %v38
    %v73 = vunpack.c.h.b16 %v38
    %v74 = vunpack.c.l.b16 %v39
    %v75 = vunpack.c.h.b16 %v39
    %v76 = vpack.c.b16 %v66, %v64
    %v77 = vpack.c.b16 %v67, %v65
    %v78 = vpack.c.b16 %v70, %v68
    %v79 = vpack.c.b16 %v71, %v69
    %v80 = vpack.c.b16 %v74, %v72
    %v81 = vpack.c.b16 %v75, %v73
    %v103 = vunpack.c.l.b16 %v40
    %v104 = vunpack.c.l.b16 %v41
    %v105 = vunpack.c.l.b16 %v42
    %v106 = vunpack.c.l.b16 %v43
    %v107 = vunpack.c.l.b16 %v44
    %v108 = vunpack.c.l.b16 %v45
    %v109 = vunpack.c.l.b16 %v46
    %v110 = vunpack.c.l.b16 %v47
    %v111 = vunpack.c.l.b16 %v48
    %v112 = vunpack.c.l.b16 %v49
    %v113 = vunpack.c.l.b16 %v50
    %v114 = vunpack.c.l.b16 %v51
    %v115 = vunpack.c.l.b16 %v52
    %v116 = vunpack.c.l.b16 %v53
    %v117 = vunpack.c.l.b16 %v54
    %v118 = vunpack.c.l.b16 %v55
    %v119 = vunpack.c.l.b16 %v56
    %v120 = vunpack.c.l.b16 %v57
    %v121 = vpack.c.b16 %v104, %v103
    %v122 = vpack.c.b16 %v106, %v105
    %v123 = vpack.c.b16 %v108, %v107
    %v124 = vpack.c.b16 %v110, %v109
    %v125 = vpack.c.b16 %v112, %v111
    %v126 = vpack.c.b16 %v114, %v113
    %v127 = vpack.c.b16 %v116, %v115
    %v128 = vpack.c.b16 %v118, %v117
    %v129 = vpack.c.b16 %v120, %v119
    %vm138 = vcmask 97280
    %v140 = vsel %vm138, %v77, 0
    %v143 = vsel %vm138, %v79, 0
    %v146 = vsel %vm138, %v81, 0
    %vm148 = vcmask 1045504
    %v150 = vsel %vm148, %v129, 0
    %152 = vmatprep.subr.bf16.mxu0 0
    %153 = vmatpush1.bf16.msra.mxu0 %v121
    %154 = vmatprep.subr.bf16.mxu0 0
    %155 = vmatpush1.bf16.msra.mxu0 %v122
    %156 = vmatprep.subr.bf16.mxu0 0
    %157 = vmatpush1.bf16.msra.mxu0 %v123
    %158 = vmatprep.subr.bf16.mxu0 0
    %159 = vmatpush1.bf16.msra.mxu0 %v124
    %160 = vmatprep.subr.bf16.mxu0 0
    %161 = vmatpush1.bf16.msra.mxu0 %v125
    %162 = vmatprep.subr.bf16.mxu0 0
    %163 = vmatpush1.bf16.msra.mxu0 %v126
    %164 = vmatprep.subr.bf16.mxu0 0
    %165 = vmatpush1.bf16.msra.mxu0 %v127
    %166 = vmatprep.subr.bf16.mxu0 0
    %167 = vmatpush1.bf16.msra.mxu0 %v128
    %168 = vmatprep.subr.bf16.mxu0 0
    %169 = vmatpush1.bf16.msra.mxu0 %v150
    %170 = vmatprep.subr.bf16.mxu0 0
    %171 = vmatpush1.bf16.msra.mxu0 0
    %172 = vmatprep.subr.bf16.mxu0 0
    %173 = vmatpush1.bf16.msra.mxu0 0
    %174 = vmatprep.subr.bf16.mxu0 0
    %175 = vmatpush1.bf16.msra.mxu0 0
    %176 = vmatprep.subr.bf16.mxu0 0
    %177 = vmatpush1.bf16.msra.mxu0 0
    %178 = vmatprep.subr.bf16.mxu0 0
    %179 = vmatpush1.bf16.msra.mxu0 0
    %180 = vmatprep.subr.bf16.mxu0 0
    %181 = vmatpush1.bf16.msra.mxu0 0
    %182 = vmatprep.subr.bf16.mxu0 0
    %183 = vmatpush1.bf16.msra.mxu0 0
    %184 = vmatprep.mubr.bf16.mxu0 %v140
    %185 = vmatmul.mubr.bf16.gmra.mrb[0].mxu0 %v76
    %v186 = vpop.f32.mrb[0].mxu0
    %v187 = vadd.f32 0.0, %v186
    %v188 = vpop.f32.mrb[0].mxu0
    %v189 = vpop.f32.mrb[0].mxu0
    %v190 = vadd.f32 0.0, %v189
    %v191 = vpop.f32.mrb[0].mxu0
    %192 = vmatprep.mubr.bf16.mxu0 %v143
    %193 = vmatmul.mubr.bf16.gmra.mrb[0].mxu0 %v78
    %v194 = vpop.f32.mrb[0].mxu0
    %v195 = vadd.f32 0.0, %v194
    %v196 = vpop.f32.mrb[0].mxu0
    %v197 = vpop.f32.mrb[0].mxu0
    %v198 = vadd.f32 0.0, %v197
    %v199 = vpop.f32.mrb[0].mxu0
    %200 = vmatprep.mubr.bf16.mxu0 %v146
    %201 = vmatmul.mubr.bf16.gmra.mrb[0].mxu0 %v80
    %v202 = vpop.f32.mrb[0].mxu0
    %v203 = vadd.f32 0.0, %v202
    %v204 = vpop.f32.mrb[0].mxu0
    %v205 = vpop.f32.mrb[0].mxu0
    %v206 = vadd.f32 0.0, %v205
    %v207 = vpop.f32.mrb[0].mxu0
    %208 = vdwg.mxu0
    %v209 = vmax.f32 %v187, %v198
    %v210 = vmax.f32 %v190, %v203
    %v211 = vmax.f32 %v195, %v206
    %215 = vrot.lane.b32.xlu0 %v209, 80
    %v216 = vpop.permute.xlu0 %215
    %217 = vrot.lane.b32.xlu0 %v210, 80
    %v218 = vpop.permute.xlu0 %217
    %219 = vrot.lane.b32.xlu0 %v211, 80
    %v220 = vpop.permute.xlu0 %219
    %v224 = vmax.f32 %v209, %v216
    %v225 = vmax.f32 %v210, %v218
    %v226 = vmax.f32 %v211, %v220
    %v227 = vld [vmem:[%s2] sm:$0x1]
    %v229 = vlaneseq
    %v230 = vshrl.u32 %v229, 7
    %v231 = vsub.s32 0, %v230
    %v232 = vrot.slane %v227, %v231
    %v234 = vadd.f32 %v224, %v232
    %v235 = vadd.f32 %v225, %v232
    %v236 = vadd.f32 %v226, %v232
    %v237 = vmax.f32 %v234, 0.0
    %v238 = vmax.f32 %v235, 0.0
    %v239 = vmax.f32 %v236, 0.0
    %vm242 = vcmask 1043456
    %v243 = vrot.slane %v238, 4
    %v244 = vrot.slane %v239, 4
    %v245 = vsel %vm242, %v243, %v244
    %246 = vrot.lane.b32.xlu0 %v245, 48
    %v247 = vpop.permute.xlu0 %246
    %v250 = vrot.slane %v237, 1
    %251 = vrot.lane.b32.xlu0 %v250, 96
    %v252 = vpop.permute.xlu0 %251
    %vm254 = vcmask 392192
    %v255 = vsel %vm254, %v237, %v247
    %vm256 = vcmask 785408
    %v257 = vsel %vm256, %v255, %v252
    %258 = vrot.lane.b32.xlu0 %v244, 48
    %v259 = vpop.permute.xlu0 %258
    %vm261 = vcmask 1046528
    %v262 = vrot.slane %v238, 1
    %v263 = vsel %vm261, %v250, %v262
    %264 = vrot.lane.b32.xlu0 %v263, 96
    %v265 = vpop.permute.xlu0 %264
    %266 = vrot.lane.b32.xlu0 %v262, 96
    %v267 = vpop.permute.xlu0 %266
    %v270 = vsel %vm254, %v237, %v259
    %v271 = vsel %vm254, %v238, %v259
    %v272 = vsel %vm256, %v270, %v265
    %v273 = vsel %vm256, %v271, %v267
    %v274 = vrot.slane %v237, 5
    %275 = vrot.lane.b32.xlu0 %v274, 48
    %v276 = vpop.permute.xlu0 %275
    %v278 = vrot.slane %v239, 1
    %v279 = vsel %vm261, %v262, %v278
    %280 = vrot.lane.b32.xlu0 %v279, 96
    %v281 = vpop.permute.xlu0 %280
    %282 = vrot.lane.b32.xlu0 %v278, 96
    %v283 = vpop.permute.xlu0 %282
    %v286 = vsel %vm254, %v238, %v276
    %v287 = vsel %vm254, %v239, %v276
    %v288 = vsel %vm256, %v286, %v281
    %v289 = vsel %vm256, %v287, %v283
    %vm290 = vcmask 1042432
    %v291 = vrot.slane %v238, 5
    %v292 = vsel %vm290, %v274, %v291
    %293 = vrot.lane.b32.xlu0 %v292, 48
    %v294 = vpop.permute.xlu0 %293
    %v296 = vsel %vm254, %v239, %v294
    %v297 = vsel %vm256, %v296, %v283
    %v300 = vrot.slane %v272, 1
    %v301 = vrot.slane %v273, 1
    %v302 = vsel %vm261, %v300, %v301
    %v303 = vrot.slane %v265, 1
    %v304 = vrot.slane %v267, 1
    %v305 = vsel %vm261, %v303, %v304
    %v312 = vrot.slane %v288, 2
    %v313 = vrot.slane %v289, 2
    %v314 = vsel %vm148, %v312, %v313
    %v315 = vrot.slane %v281, 2
    %v316 = vrot.slane %v283, 2
    %v317 = vsel %vm148, %v315, %v316
    %v321 = vrot.slane %v297, 3
    %v322 = vrot.slane %v283, 3
    %vm325 = vcmask 1044480
    %v326 = vsel %vm325, %v257, %v302
    %v327 = vsel %vm325, %v252, %v305
    %vm328 = vcmask 1041408
    %v329 = vsel %vm328, %v301, %v314
    %v330 = vsel %vm328, %v304, %v317
    %v331 = vsel %vm261, %v329, %v321
    %v332 = vsel %vm261, %v330, %v322
    %v333 = vpack.c.bf16 %v331, %v326
    %v334 = vpack.c.bf16 %v332, %v327
    %v335 = vpack.c.bf16 %v321, %v321
    %v336 = vpack.c.bf16 %v322, %v322
    %v337 = vld [vmem:[%s3] sm:$0xf]
    %v338 = vld [vmem:[%s3 + $0x4] sm:$0xf]
    %v339 = vld [vmem:[%s3 + $0x8] sm:$0xf]
    %v340 = vld [vmem:[%s3 + $0xc] sm:$0xf]
    %v341 = vld [vmem:[%s3 + $0x10] sm:$0xf]
    %v342 = vld [vmem:[%s3 + $0x14] sm:$0xf]
    %v343 = vld [vmem:[%s3 + $0x18] sm:$0xf]
    %v344 = vld [vmem:[%s3 + $0x1c] sm:$0xf]
    %v345 = vld [vmem:[%s3 + $0x20] sm:$0xf]
    %v346 = vld [vmem:[%s3 + $0x24] sm:$0xf]
    %v347 = vld [vmem:[%s3 + $0x28] sm:$0xf]
    %v348 = vld [vmem:[%s3 + $0x2c] sm:$0xf]
    %v349 = vld [vmem:[%s3 + $0x30] sm:$0xf]
    %v350 = vld [vmem:[%s3 + $0x34] sm:$0xf]
    %v351 = vld [vmem:[%s3 + $0x38] sm:$0xf]
    %v352 = vld [vmem:[%s3 + $0x3c] sm:$0xf]
    %v353 = vld [vmem:[%s3 + $0x40] sm:$0xf]
    %v354 = vld [vmem:[%s3 + $0x44] sm:$0xf]
    %v373 = vunpack.c.l.b16 %v337
    %v374 = vunpack.c.l.b16 %v338
    %v375 = vunpack.c.l.b16 %v339
    %v376 = vunpack.c.l.b16 %v340
    %v377 = vunpack.c.l.b16 %v341
    %v378 = vunpack.c.l.b16 %v342
    %v379 = vunpack.c.l.b16 %v343
    %v380 = vunpack.c.l.b16 %v344
    %v381 = vunpack.c.l.b16 %v345
    %v382 = vunpack.c.l.b16 %v346
    %v383 = vunpack.c.l.b16 %v347
    %v384 = vunpack.c.l.b16 %v348
    %v385 = vunpack.c.l.b16 %v349
    %v386 = vunpack.c.l.b16 %v350
    %v387 = vunpack.c.l.b16 %v351
    %v388 = vunpack.c.l.b16 %v352
    %v389 = vunpack.c.l.b16 %v353
    %v390 = vunpack.c.l.b16 %v354
    %v391 = vpack.c.b16 %v374, %v373
    %v392 = vpack.c.b16 %v376, %v375
    %v393 = vpack.c.b16 %v378, %v377
    %v394 = vpack.c.b16 %v380, %v379
    %v395 = vpack.c.b16 %v382, %v381
    %v396 = vpack.c.b16 %v384, %v383
    %v397 = vpack.c.b16 %v386, %v385
    %v398 = vpack.c.b16 %v388, %v387
    %v399 = vpack.c.b16 %v390, %v389
    %vm409 = vcmask 130048
    %v411 = vsel %vm409, %v334, 0
    %v414 = vsel %vm409, %v336, 0
    %416 = vmatprep.subr.bf16.mxu0 0
    %417 = vmatpush1.bf16.msra.mxu0 %v391
    %418 = vmatprep.subr.bf16.mxu0 0
    %419 = vmatpush1.bf16.msra.mxu0 %v392
    %420 = vmatprep.subr.bf16.mxu0 0
    %421 = vmatpush1.bf16.msra.mxu0 %v393
    %422 = vmatprep.subr.bf16.mxu0 0
    %423 = vmatpush1.bf16.msra.mxu0 %v394
    %424 = vmatprep.subr.bf16.mxu0 0
    %425 = vmatpush1.bf16.msra.mxu0 %v395
    %426 = vmatprep.subr.bf16.mxu0 0
    %427 = vmatpush1.bf16.msra.mxu0 %v396
    %428 = vmatprep.subr.bf16.mxu0 0
    %429 = vmatpush1.bf16.msra.mxu0 %v397
    %430 = vmatprep.subr.bf16.mxu0 0
    %431 = vmatpush1.bf16.msra.mxu0 %v398
    %432 = vmatprep.subr.bf16.mxu0 0
    %433 = vmatpush1.bf16.msra.mxu0 %v399
    %434 = vmatprep.subr.bf16.mxu0 0
    %435 = vmatpush1.bf16.msra.mxu0 0
    %436 = vmatprep.subr.bf16.mxu0 0
    %437 = vmatpush1.bf16.msra.mxu0 0
    %438 = vmatprep.subr.bf16.mxu0 0
    %439 = vmatpush1.bf16.msra.mxu0 0
    %440 = vmatprep.subr.bf16.mxu0 0
    %441 = vmatpush1.bf16.msra.mxu0 0
    %442 = vmatprep.subr.bf16.mxu0 0
    %443 = vmatpush1.bf16.msra.mxu0 0
    %444 = vmatprep.subr.bf16.mxu0 0
    %445 = vmatpush1.bf16.msra.mxu0 0
    %446 = vmatprep.subr.bf16.mxu0 0
    %447 = vmatpush1.bf16.msra.mxu0 0
    %448 = vmatprep.mubr.bf16.mxu0 %v411
    %449 = vmatmul.mubr.bf16.gmra.mrb[0].mxu0 %v333
    %v450 = vpop.f32.mrb[0].mxu0
    %v451 = vadd.f32 0.0, %v450
    %v452 = vpop.f32.mrb[0].mxu0
    %v453 = vpop.f32.mrb[0].mxu0
    %v454 = vadd.f32 0.0, %v453
    %v455 = vpop.f32.mrb[0].mxu0
    %456 = vmatprep.mubr.bf16.mxu0 %v414
    %457 = vmatmul.mubr.bf16.gmra.mrb[0].mxu0 %v335
    %v458 = vpop.f32.mrb[0].mxu0
    %v459 = vadd.f32 0.0, %v458
    %v460 = vpop.f32.mrb[0].mxu0
    %v461 = vpop.f32.mrb[0].mxu0
    %v462 = vpop.f32.mrb[0].mxu0
    %463 = vdwg.mxu0
    %v466 = vrot.slane %v454, 2
    %v467 = vrot.slane %v459, 2
    %v468 = vsel %vm148, %v466, %v467
    %v471 = vmax.f32 %v451, %v468
    %v472 = vmax.f32 %v454, %v467
    %475 = vrot.lane.b32.xlu0 %v471, 88
    %v476 = vpop.permute.xlu0 %475
    %477 = vrot.lane.b32.xlu0 %v472, 88
    %v478 = vpop.permute.xlu0 %477
    %v481 = vmax.f32 %v471, %v476
    %v482 = vmax.f32 %v472, %v478
    %v483 = vld [vmem:[%s4] sm:$0x1]
    %v485 = vlaneseq
    %v486 = vshrl.u32 %v485, 7
    %v487 = vsub.s32 0, %v486
    %v488 = vrot.slane %v483, %v487
    %v490 = vadd.f32 %v481, %v488
    %v491 = vadd.f32 %v482, %v488
    %v492 = vmax.f32 %v490, 0.0
    %v493 = vmax.f32 %v491, 0.0
    %v495 = vrot.slane %v492, 1
    %496 = vrot.lane.b32.xlu0 %v495, 40
    %v497 = vpop.permute.xlu0 %496
    %v499 = vrot.slane %v492, 2
    %500 = vrot.lane.b32.xlu0 %v499, 80
    %v501 = vpop.permute.xlu0 %500
    %v503 = vrot.slane %v492, 3
    %504 = vrot.lane.b32.xlu0 %v503, 120
    %v505 = vpop.permute.xlu0 %504
    %v507 = vrot.slane %v492, 4
    %508 = vrot.lane.b32.xlu0 %v507, 32
    %v509 = vpop.permute.xlu0 %508
    %vm511 = vcmask 326656
    %v512 = vsel %vm511, %v492, %v497
    %vm513 = vcmask 654336
    %v514 = vsel %vm513, %v512, %v501
    %vm515 = vcmask 982016
    %v516 = vsel %vm515, %v514, %v505
    %vm517 = vcmask 261120
    %v518 = vsel %vm517, %v505, %v509
    %v520 = vrot.slane %v493, 3
    %521 = vrot.lane.b32.xlu0 %v520, 120
    %v522 = vpop.permute.xlu0 %521
    %v524 = vrot.slane %v493, 4
    %525 = vrot.lane.b32.xlu0 %v524, 32
    %v526 = vpop.permute.xlu0 %525
    %v528 = vsel %vm515, %v514, %v522
    %v529 = vsel %vm517, %v522, %v526
    %v532 = vrot.slane %v528, 4
    %v533 = vrot.slane %v529, 4
    %vm536 = vcmask 1040384
    %v537 = vsel %vm536, %v516, %v532
    %v538 = vsel %vm536, %v518, %v533
    %v539 = vpack.c.bf16 %v537, %v537
    %v540 = vpack.c.bf16 %v538, %v538
    %v541 = vld [vmem:[%s5] sm:$0xf]
    %v542 = vld [vmem:[%s5 + $0x4] sm:$0xf]
    %v543 = vld [vmem:[%s5 + $0x8] sm:$0xf]
    %v544 = vld [vmem:[%s5 + $0xc] sm:$0xf]
    %v545 = vld [vmem:[%s5 + $0x10] sm:$0xf]
    %v546 = vld [vmem:[%s5 + $0x14] sm:$0xf]
    %v547 = vld [vmem:[%s5 + $0x18] sm:$0xf]
    %v548 = vld [vmem:[%s5 + $0x1c] sm:$0xf]
    %v549 = vld [vmem:[%s5 + $0x20] sm:$0xf]
    %v550 = vld [vmem:[%s5 + $0x24] sm:$0xf]
    %v551 = vld [vmem:[%s5 + $0x28] sm:$0xf]
    %v552 = vld [vmem:[%s5 + $0x2c] sm:$0xf]
    %v553 = vld [vmem:[%s5 + $0x30] sm:$0xf]
    %v554 = vld [vmem:[%s5 + $0x34] sm:$0xf]
    %v555 = vld [vmem:[%s5 + $0x38] sm:$0xf]
    %v556 = vld [vmem:[%s5 + $0x3c] sm:$0xf]
    %v557 = vld [vmem:[%s5 + $0x40] sm:$0xf]
    %v558 = vld [vmem:[%s5 + $0x44] sm:$0xf]
    %v559 = vld [vmem:[%s5 + $0x48] sm:$0xf]
    %v560 = vld [vmem:[%s5 + $0x4c] sm:$0xf]
    %v561 = vld [vmem:[%s5 + $0x50] sm:$0xf]
    %v562 = vld [vmem:[%s5 + $0x54] sm:$0xf]
    %v563 = vld [vmem:[%s5 + $0x58] sm:$0xf]
    %v564 = vld [vmem:[%s5 + $0x5c] sm:$0xf]
    %v565 = vld [vmem:[%s5 + $0x60] sm:$0xf]
    %v566 = vld [vmem:[%s6] sm:$0x1]
    %v568 = vlaneseq
    %v569 = vshrl.u32 %v568, 7
    %v570 = vsub.s32 0, %v569
    %v571 = vrot.slane %v566, %v570
    %v598 = vunpack.c.l.b16 %v541
    %v599 = vunpack.c.l.b16 %v542
    %v600 = vunpack.c.l.b16 %v543
    %v601 = vunpack.c.l.b16 %v544
    %v602 = vunpack.c.l.b16 %v545
    %v603 = vunpack.c.l.b16 %v546
    %v604 = vunpack.c.l.b16 %v547
    %v605 = vunpack.c.l.b16 %v548
    %v606 = vunpack.c.l.b16 %v549
    %v607 = vunpack.c.l.b16 %v550
    %v608 = vunpack.c.l.b16 %v551
    %v609 = vunpack.c.l.b16 %v552
    %v610 = vunpack.c.l.b16 %v553
    %v611 = vunpack.c.l.b16 %v554
    %v612 = vunpack.c.l.b16 %v555
    %v613 = vunpack.c.l.b16 %v556
    %v614 = vunpack.c.l.b16 %v557
    %v615 = vunpack.c.l.b16 %v558
    %v616 = vunpack.c.l.b16 %v559
    %v617 = vunpack.c.l.b16 %v560
    %v618 = vunpack.c.l.b16 %v561
    %v619 = vunpack.c.l.b16 %v562
    %v620 = vunpack.c.l.b16 %v563
    %v621 = vunpack.c.l.b16 %v564
    %v622 = vunpack.c.l.b16 %v565
    %v623 = vpack.c.b16 %v599, %v598
    %v624 = vpack.c.b16 %v601, %v600
    %v625 = vpack.c.b16 %v603, %v602
    %v626 = vpack.c.b16 %v605, %v604
    %v627 = vpack.c.b16 %v607, %v606
    %v628 = vpack.c.b16 %v609, %v608
    %v629 = vpack.c.b16 %v611, %v610
    %v630 = vpack.c.b16 %v613, %v612
    %v631 = vpack.c.b16 %v615, %v614
    %v632 = vpack.c.b16 %v617, %v616
    %v633 = vpack.c.b16 %v619, %v618
    %v634 = vpack.c.b16 %v621, %v620
    %v635 = vpack.c.b16 %v622, %v622
    %vm648 = vcmask 588800
    %v650 = vsel %vm648, %v540, 0
    %v653 = vsel %vm242, %v635, 0
    %655 = vmatprep.subr.bf16.mxu0 0
    %656 = vmatpush1.bf16.msra.mxu0 %v623
    %657 = vmatprep.subr.bf16.mxu0 0
    %658 = vmatpush1.bf16.msra.mxu0 %v624
    %659 = vmatprep.subr.bf16.mxu0 0
    %660 = vmatpush1.bf16.msra.mxu0 %v625
    %661 = vmatprep.subr.bf16.mxu0 0
    %662 = vmatpush1.bf16.msra.mxu0 %v626
    %663 = vmatprep.subr.bf16.mxu0 0
    %664 = vmatpush1.bf16.msra.mxu0 %v627
    %665 = vmatprep.subr.bf16.mxu0 0
    %666 = vmatpush1.bf16.msra.mxu0 %v628
    %667 = vmatprep.subr.bf16.mxu0 0
    %668 = vmatpush1.bf16.msra.mxu0 %v629
    %669 = vmatprep.subr.bf16.mxu0 0
    %670 = vmatpush1.bf16.msra.mxu0 %v630
    %671 = vmatprep.subr.bf16.mxu0 0
    %672 = vmatpush1.bf16.msra.mxu0 %v631
    %673 = vmatprep.subr.bf16.mxu0 0
    %674 = vmatpush1.bf16.msra.mxu0 %v632
    %675 = vmatprep.subr.bf16.mxu0 0
    %676 = vmatpush1.bf16.msra.mxu0 %v633
    %677 = vmatprep.subr.bf16.mxu0 0
    %678 = vmatpush1.bf16.msra.mxu0 %v634
    %679 = vmatprep.subr.bf16.mxu0 0
    %680 = vmatpush1.bf16.msra.mxu0 %v653
    %681 = vmatprep.subr.bf16.mxu0 0
    %682 = vmatpush1.bf16.msra.mxu0 0
    %683 = vmatprep.subr.bf16.mxu0 0
    %684 = vmatpush1.bf16.msra.mxu0 0
    %685 = vmatprep.subr.bf16.mxu0 0
    %686 = vmatpush1.bf16.msra.mxu0 0
    %687 = vmatprep.mubr.bf16.mxu0 %v650
    %688 = vmatmul.mubr.bf16.gmra.mrb[0].mxu0 %v539
    %v689 = vpop.f32.mrb[0].mxu0
    %v690 = vadd.f32 %v571, %v689
    %v691 = vpop.f32.mrb[0].mxu0
    %v692 = vpop.f32.mrb[0].mxu0
    %v693 = vpop.f32.mrb[0].mxu0
    %694 = vdwg.mxu0
    %v695 = vmax.f32 %v690, 0.0
    %v696 = vpack.c.bf16 %v695, %v695
    %v697 = vld [vmem:[%s7] sm:$0xf]
    %v698 = vld [vmem:[%s7 + $0x4] sm:$0xf]
    %v699 = vld [vmem:[%s7 + $0x8] sm:$0xf]
    %v700 = vld [vmem:[%s7 + $0xc] sm:$0xf]
    %v701 = vld [vmem:[%s7 + $0x10] sm:$0xf]
    %v702 = vld [vmem:[%s7 + $0x14] sm:$0xf]
    %v703 = vld [vmem:[%s7 + $0x18] sm:$0x1]
    %v704 = vld [vmem:[%s8] sm:$0x1]
    %v706 = vlaneseq
    %v707 = vshrl.u32 %v706, 7
    %v708 = vsub.s32 0, %v707
    %v709 = vrot.slane %v704, %v708
    %v718 = vunpack.c.l.b16 %v697
    %v719 = vunpack.c.l.b16 %v698
    %v720 = vunpack.c.l.b16 %v699
    %v721 = vunpack.c.l.b16 %v700
    %v722 = vunpack.c.l.b16 %v701
    %v723 = vunpack.c.l.b16 %v702
    %v724 = vunpack.c.l.b16 %v703
    %v725 = vpack.c.b16 %v719, %v718
    %v726 = vpack.c.b16 %v721, %v720
    %v727 = vpack.c.b16 %v723, %v722
    %v728 = vpack.c.b16 %v724, %v724
    %vm732 = vcmask 408576
    %v734 = vsel %vm732, %v696, 0
    %v737 = vsel %vm536, %v728, 0
    %739 = vmatprep.subr.bf16.mxu0 0
    %740 = vmatpush1.bf16.msra.mxu0 %v725
    %741 = vmatprep.subr.bf16.mxu0 0
    %742 = vmatpush1.bf16.msra.mxu0 %v726
    %743 = vmatprep.subr.bf16.mxu0 0
    %744 = vmatpush1.bf16.msra.mxu0 %v727
    %745 = vmatprep.subr.bf16.mxu0 0
    %746 = vmatpush1.bf16.msra.mxu0 %v737
    %747 = vmatprep.subr.bf16.mxu0 0
    %748 = vmatpush1.bf16.msra.mxu0 0
    %749 = vmatprep.subr.bf16.mxu0 0
    %750 = vmatpush1.bf16.msra.mxu0 0
    %751 = vmatprep.subr.bf16.mxu0 0
    %752 = vmatpush1.bf16.msra.mxu0 0
    %753 = vmatprep.subr.bf16.mxu0 0
    %754 = vmatpush1.bf16.msra.mxu0 0
    %755 = vmatprep.subr.bf16.mxu0 0
    %756 = vmatpush1.bf16.msra.mxu0 0
    %757 = vmatprep.subr.bf16.mxu0 0
    %758 = vmatpush1.bf16.msra.mxu0 0
    %759 = vmatprep.subr.bf16.mxu0 0
    %760 = vmatpush1.bf16.msra.mxu0 0
    %761 = vmatprep.subr.bf16.mxu0 0
    %762 = vmatpush1.bf16.msra.mxu0 0
    %763 = vmatprep.subr.bf16.mxu0 0
    %764 = vmatpush1.bf16.msra.mxu0 0
    %765 = vmatprep.subr.bf16.mxu0 0
    %766 = vmatpush1.bf16.msra.mxu0 0
    %767 = vmatprep.subr.bf16.mxu0 0
    %768 = vmatpush1.bf16.msra.mxu0 0
    %769 = vmatprep.subr.bf16.mxu0 0
    %770 = vmatpush1.bf16.msra.mxu0 0
    %771 = vmatprep.mubr.bf16.mxu0 0
    %772 = vmatmul.mubr.bf16.gmra.mrb[0].mxu0 %v734
    %v773 = vpop.f32.mrb[0].mxu0
    %v774 = vadd.f32 %v709, %v773
    %v775 = vpop.f32.mrb[0].mxu0
    %v776 = vpop.f32.mrb[0].mxu0
    %v777 = vpop.f32.mrb[0].mxu0
    %778 = vdwg.mxu0
    %vm779 = vcmask 74752
    %v780 = vsel %vm779, %v774, -inf
    %781 = vmax.xlane.f32.xlu0 %v780
    %v782 = vpop.xlane.xlu0 %781
    %v783 = vsub.f32 %v774, %v782
    %v784 = vmul.f32 %v783, 1.442695
    %v785 = vpow.pop %v784
    %v786 = vsel %vm779, %v785, 0.0
    %787 = vadd.xlane.f32.xlu0 %v786
    %v788 = vpop.xlane.xlu0 %787
    %v789 = vlog2.pop %v788
    %v790 = vmul.f32 %v789, 0.6931472
    %v791 = vadd.f32 %v790, %v782
    %v792 = vsub.f32 %v774, %v791
    %793 = vst.msk [vmem:[#allocation2] sm:$0x3] %vm779, %v792
    // Predicated region
    $region38: #{ex_network_forward.1} parent=1 // pred_check
      _
    $region39: #{ex_network_forward.1} parent=1 // pred_check_branch
      %795 = sbr.rel (0) target = $region41
    $region40: #{ex_network_forward.1} parent=1 // pred_region
      %s797 = ssub.s32 32, 32
      %798 = vsyncadd [#allocation3], %s797
      %s800 = sshll.u32 [#allocation2], 4
      %s801 = int_to_ptr.vmem [resolvable:$true] %s800
      %803 = dma.vmem_to_hbm [thread:$0]  %s801, 32, %s9, [#allocation3]
    $region41: #{ex_network_forward.1} parent=1 // pred_fallthru
      _
    // Predicated region
    $region42: #{ex_network_forward.1} parent=1 // pred_check
      _
    $region43: #{ex_network_forward.1} parent=1 // pred_check_branch
      %805 = sbr.rel (0) target = $region45
    $region44: #{ex_network_forward.1} parent=1 // pred_region
      %806 = dma.done [#allocation3], 32
    $region45: #{ex_network_forward.1} parent=1 // pred_fallthru
      _
    %807 = vsyncpa [#allocation3], 1

</llo_original>
